<compile_context>
chip_gen: v5e
topology: v5e:2x2
jax: 0.10.0
libtpu: 0.0.40
codegen_flags: <defaults>
</compile_context>

<pallas_src>
import functools

import jax
import jax.numpy as jnp
from jax import lax
from jax.experimental import pallas as pl
from jax.experimental.pallas import tpu as pltpu


def _round_up(x, m):
    return ((x + m - 1) // m) * m


def _tpu_vmem_bytes():
    try:
        return int(pltpu.get_tpu_info().vmem_capacity_bytes)
    except Exception:
        return 64 * 1024 * 1024        # assume the tightest (v7x-sized) budget


# ---------------------------------------------------------------------------
# Hoisted dense matmul (+ optional bias):  (M, K) @ (K, N) + bias
# ---------------------------------------------------------------------------
def _matmul_bias_k1_kernel(a_ref, b_ref, bias_ref, o_ref):
    # K fits a single block -> no accumulator scratch / epilogue needed.
    o_ref[...] = (jnp.dot(a_ref[...], b_ref[...],
                          preferred_element_type=jnp.float32)
                  + bias_ref[...]).astype(o_ref.dtype)


def _matmul_bias_kernel(a_ref, b_ref, bias_ref, o_ref, acc_ref):
    k = pl.program_id(2)

    @pl.when(k == 0)
    def _():
        acc_ref[...] = jnp.zeros_like(acc_ref)

    acc_ref[...] += jnp.dot(a_ref[...], b_ref[...],
                            preferred_element_type=jnp.float32)

    @pl.when(k == pl.num_programs(2) - 1)
    def _():
        o_ref[...] = (acc_ref[...] + bias_ref[...]).astype(o_ref.dtype)


def _matmul_bias(a, b, bias=None, *, out_dtype=jnp.float32,
                 vmem_limit_bytes=48 * 1024 * 1024):
    """Tiled, bias-fused matmul on the MXU with f32 accumulation."""
    M, K = a.shape
    Kb, N = b.shape
    assert K == Kb
    Mp0 = _round_up(M, 8)
    Kp0 = _round_up(K, 128)
    Np0 = _round_up(N, 128)

    # These GEMMs are HBM-bound at RNN sizes: use big lane-dense tiles and
    # collapse the k grid axis whenever K is small so the accumulator
    # round-trip disappears.
    tk = Kp0 if Kp0 <= 512 else 512
    tn = Np0 if Np0 <= 1024 else 512
    tm = min(512, Mp0)

    Mp, Kp, Np = _round_up(M, tm), _round_up(K, tk), _round_up(N, tn)

    a_p = jnp.pad(a, ((0, Mp - M), (0, Kp - K)))
    b_p = jnp.pad(b, ((0, Kp - K), (0, Np - N)))
    if bias is None:
        bias_p = jnp.zeros((1, Np), jnp.float32)
    else:
        bias_p = jnp.pad(bias.astype(jnp.float32).reshape(1, -1),
                         ((0, 0), (0, Np - N)))

    if Kp == tk:     # single reduction step -> simpler kernel, no scratch
        out = pl.pallas_call(
            _matmul_bias_k1_kernel,
            out_shape=jax.ShapeDtypeStruct((Mp, Np), out_dtype),
            grid_spec=pltpu.PrefetchScalarGridSpec(
                num_scalar_prefetch=0,
                grid=(Mp // tm, Np // tn),
                in_specs=[
                    pl.BlockSpec((tm, Kp), lambda i, j: (i, 0)),
                    pl.BlockSpec((Kp, tn), lambda i, j: (0, j)),
                    pl.BlockSpec((1, tn), lambda i, j: (0, j)),
                ],
                out_specs=pl.BlockSpec((tm, tn), lambda i, j: (i, j)),
            ),
            compiler_params=pltpu.CompilerParams(
                dimension_semantics=("parallel", "parallel"),
                vmem_limit_bytes=vmem_limit_bytes,
            ),
        )(a_p, b_p, bias_p)
    else:
        out = pl.pallas_call(
            _matmul_bias_kernel,
            out_shape=jax.ShapeDtypeStruct((Mp, Np), out_dtype),
            grid_spec=pltpu.PrefetchScalarGridSpec(
                num_scalar_prefetch=0,
                grid=(Mp // tm, Np // tn, Kp // tk),
                in_specs=[
                    pl.BlockSpec((tm, tk), lambda i, j, k: (i, k)),
                    pl.BlockSpec((tk, tn), lambda i, j, k: (k, j)),
                    pl.BlockSpec((1, tn), lambda i, j, k: (0, j)),
                ],
                out_specs=pl.BlockSpec((tm, tn), lambda i, j, k: (i, j)),
                scratch_shapes=[pltpu.VMEM((tm, tn), jnp.float32)],
            ),
            compiler_params=pltpu.CompilerParams(
                dimension_semantics=("parallel", "parallel", "arbitrary"),
                vmem_limit_bytes=vmem_limit_bytes,
            ),
        )(a_p, b_p, bias_p)
    return out[:M, :N]


# ---------------------------------------------------------------------------
# Fused i2h + sequential recurrence kernel.
#   grid = (batch_blocks, time_chunks); the chunk axis is sequential.
#   z = x_chunk @ Wi + bh   (one chunk-wide MXU matmul into VMEM scratch)
#   h_t = relu(z_t + h_{t-1} @ Wh)
# ---------------------------------------------------------------------------
def _recurrence_kernel(x_ref, wi_ref, bh_ref, wh_ref, hid_ref, h_scr, z_scr,
                       *, unroll):
    @pl.when(pl.program_id(1) == 0)
    def _():
        h_scr[...] = jnp.zeros_like(h_scr)

    T, B, DI = x_ref.shape
    DH = wh_ref.shape[1]

    # Fused i2h for the whole chunk: one big (T*B, DI)@(DI, DH) MXU matmul
    # with the bias folded in -> Z never round-trips through HBM.
    z_scr[...] = (
        jnp.dot(x_ref[...].reshape(T * B, DI), wi_ref[...],
                preferred_element_type=jnp.float32)
        + bh_ref[...]
    ).reshape(T, B, DH)

    wh = wh_ref[...]                               # resident weight, read once

    def step(t, h):
        zh = jnp.dot(h, wh, preferred_element_type=jnp.float32)
        h_new = jnp.maximum(z_scr[t] + zh, 0.0)    # phi = relu, f32 VPU
        h_out = h_new.astype(hid_ref.dtype)        # cast reused as the carry
        hid_ref[t] = h_out                         # lane-dense writeback
        return h_out

    h_scr[...] = lax.fori_loop(0, T, step, h_scr[...], unroll=unroll)


# ---------------------------------------------------------------------------
# Wrapper: pad, run the fused recurrence, then the hoisted h2o matmul.
# ---------------------------------------------------------------------------
def rnn_forward(x, wi_t, wh_t, bh, wo_t, *, param_dtype=jnp.float32,
                max_chunk=128):
    """x: (seq, batch, d_input) or (seq, d_input). Returns (hidden, output)."""
    # TODO(synk): the module's optional `mask`/`delay` args and the softmax
    # output activation are not implemented (defaults mask=None, delay=0,
    # output_activation=None are).
    orig_2d = (x.ndim == 2)
    if orig_2d:
        x = x[:, None, :]
    seq, batch, d_input = x.shape
    d_hidden = wh_t.shape[0]
    d_output = wo_t.shape[1]

    itemsize = jnp.dtype(param_dtype).itemsize

    # ---- generation-aware VMEM budgets ------------------------------------
    vmem_phys = _tpu_vmem_bytes()
    big_vmem = vmem_phys >= 100 * 1024 * 1024      # v5e/v6e: 128 MiB per core
    vmem_limit = (96 if big_vmem else 48) * 1024 * 1024
    recur_budget = vmem_limit - 8 * 1024 * 1024    # compiler-scratch headroom
    # The only current generation with <100 MiB VMEM per core (v7x) is also
    # the one with 2 TensorCores per chip -> shard the batch axis there.
    multi_tc = not big_vmem

    # ---- padded, hardware-friendly extents --------------------------------
    sub = int(max(8, 32 // itemsize))              # sublane packing (8 f32, 16 bf16)
    n_bblk = 2 if (multi_tc and _round_up(batch, sub) >= 2 * sub) else 1
    batch_p = _round_up(batch, sub * n_bblk)
    bb = batch_p // n_bblk                         # rows per batch block
    di_p = _round_up(d_input, 128)                 # lane
    dh_p = _round_up(d_hidden, 128)
    do_p = _round_up(d_output, 128)

    # ---- recurrence chunk length T from the VMEM budget --------------------
    fixed = (di_p * dh_p * itemsize                # Wi   (single-buffered)
             + dh_p * dh_p * itemsize              # Wh   (single-buffered)
             + 8 * dh_p * 4                        # bias row (padded)
             + bb * dh_p * itemsize)               # h carry scratch
    per_t = bb * (2 * di_p * itemsize              # x chunk, double-buffered
                  + 2 * dh_p * itemsize            # hidden out, double-buffered
                  + dh_p * 4)                      # z chunk scratch (f32)
    T = int(max(1, min(seq, max_chunk, (recur_budget - fixed) // per_t)))
    seq_p = _round_up(seq, T)
    n_chunks = seq_p // T

    # Full unroll for small hidden sizes keeps the LLO scheduler happy; back
    # off to partial unroll at large d_hidden to avoid vreg spills.
    unroll = True if dh_p < 1024 else 4

    # ---- pad operands ------------------------------------------------------
    x_p = jnp.pad(x.astype(param_dtype),
                  ((0, seq_p - seq), (0, batch_p - batch), (0, di_p - d_input)))
    wi_p = jnp.pad(wi_t.astype(param_dtype),
                   ((0, di_p - d_input), (0, dh_p - d_hidden)))
    wh_p = jnp.pad(wh_t.astype(param_dtype),
                   ((0, dh_p - d_hidden), (0, dh_p - d_hidden)))
    wo_p = jnp.pad(wo_t.astype(param_dtype),
                   ((0, dh_p - d_hidden), (0, do_p - d_output)))
    bh_p = jnp.pad(bh.astype(jnp.float32).reshape(1, d_hidden),
                   ((0, 0), (0, dh_p - d_hidden)))

    # Weight / bias blocks never change index -> a second pipeline buffer is
    # pure VMEM waste; single-buffer them.
    resident = functools.partial(pl.BlockSpec, pipeline_mode=pl.Buffered(1))

    # ---- Phase 1+2 (fused): i2h matmul + sequential recurrence -------------
    hidden_p = pl.pallas_call(
        functools.partial(_recurrence_kernel, unroll=unroll),
        out_shape=jax.ShapeDtypeStruct((seq_p, batch_p, dh_p), param_dtype),
        grid_spec=pltpu.PrefetchScalarGridSpec(
            num_scalar_prefetch=0,
            grid=(n_bblk, n_chunks),
            in_specs=[
                pl.BlockSpec((T, bb, di_p), lambda b, c: (c, b, 0)),   # x chunk
                resident((di_p, dh_p), lambda b, c: (0, 0)),           # Wi^T
                resident((1, dh_p), lambda b, c: (0, 0)),              # bh
                resident((dh_p, dh_p), lambda b, c: (0, 0)),           # Wh^T
            ],
            out_specs=pl.BlockSpec((T, bb, dh_p), lambda b, c: (c, b, 0)),
            scratch_shapes=[
                pltpu.VMEM((bb, dh_p), param_dtype),     # h carried over chunks
                pltpu.VMEM((T, bb, dh_p), jnp.float32),  # z = x@Wi + bh, chunk
            ],
        ),
        compiler_params=pltpu.CompilerParams(
            # Batch blocks are independent (megacore on v7x); the chunk axis
            # carries the hidden state and must stay strictly sequential.
            dimension_semantics=("parallel", "arbitrary"),
            vmem_limit_bytes=vmem_limit,
        ),
    )(x_p, wi_p, bh_p, wh_p)

    # ---- Phase 3: hoisted h2o matmul over all timesteps --------------------
    # hidden_p is consumed directly in the dtype the recurrence wrote.
    y = _matmul_bias(hidden_p.reshape(seq_p * batch_p, dh_p), wo_p,
                     out_dtype=jnp.float32, vmem_limit_bytes=vmem_limit)
    y = y.reshape(seq_p, batch_p, do_p)

    hidden = hidden_p[:seq, :batch, :d_hidden]
    output = y[:seq, :batch, :d_output]
    if orig_2d:
        hidden = hidden[:, 0, :]
        output = output[:, 0, :]
    return hidden, output


# ---------------------------------------------------------------------------
# Pure-JAX reference matching the PyTorch forward().
# ---------------------------------------------------------------------------
def _reference(x, wi_t, wh_t, bh, wo_t, precision=None):
    if x.ndim == 2:
        x = x[:, None, :]
    seq, batch, _ = x.shape
    d_hidden = wh_t.shape[0]
    h = jnp.zeros((batch, d_hidden), jnp.float32)
    hs = []
    for t in range(seq):
        z = (jnp.dot(x[t], wi_t, precision=precision)
             + jnp.dot(h, wh_t, precision=precision) + bh[None, :])
        h = jnp.maximum(z, 0.0)
        hs.append(h)
    hidden = jnp.stack(hs)
    output = jnp.dot(hidden, wo_t, precision=precision)
    return hidden, output


if __name__ == "__main__":
    seq, batch = 8, 2
    d_input, d_hidden, d_output = 4, 32, 4

    key = jax.random.PRNGKey(0)
    kx, kwi, kwh, kbh, kwo = jax.random.split(key, 5)

    # Deterministic "Lazy"-style init (std = 1/sqrt(fan_in)); weights stored
    # pre-transposed relative to torch.nn.Linear's (out, in) convention.
    wi_t = (jax.random.normal(kwi, (d_input, d_hidden), jnp.float32)
            / jnp.sqrt(d_input))
    wh_t = (jax.random.normal(kwh, (d_hidden, d_hidden), jnp.float32)
            / jnp.sqrt(d_hidden))
    bh = jax.random.normal(kbh, (d_hidden,), jnp.float32) * 0.01
    wo_t = (jax.random.normal(kwo, (d_hidden, d_output), jnp.float32)
            / jnp.sqrt(d_hidden))

    x = jax.random.normal(kx, (seq, batch, d_input), jnp.float32)

    # Demo runs in f32; pass param_dtype=jnp.bfloat16 to halve weight/x/hidden
    # DMA bytes and use the bf16 MXU path (f32 accumulation is kept).
    hidden, output = rnn_forward(x, wi_t, wh_t, bh, wo_t)
    jax.block_until_ready((hidden, output))

    assert hidden.shape == (seq, batch, d_hidden)
    assert output.shape == (seq, batch, d_output)

    # The MXU may contract f32 operands either at full f32 precision or in the
    # TPU-default bf16-input mode depending on generation / compiler defaults;
    # accept a tight match against either reference.
    ref_hi = _reference(x, wi_t, wh_t, bh, wo_t,
                        precision=lax.Precision.HIGHEST)
    ref_lo = _reference(x, wi_t, wh_t, bh, wo_t, precision=None)
    tol = dict(atol=1e-3, rtol=1e-3)
    assert (bool(jnp.allclose(hidden, ref_hi[0], **tol))
            or bool(jnp.allclose(hidden, ref_lo[0], **tol)))
    assert (bool(jnp.allclose(output, ref_hi[1], **tol))
            or bool(jnp.allclose(output, ref_lo[1], **tol)))

    print("KERNEL_OK")
</pallas_src>

<mosaic_0001>
module attributes {stable_mosaic.version = 11 : i64} {
  func.func @_recurrence_kernel(%arg0: i32, %arg1: i32, %arg2: memref<8x8x128xf32, #tpu.memory_space<vmem>>, %arg3: memref<128x128xf32, #tpu.memory_space<vmem>>, %arg4: memref<1x128xf32, #tpu.memory_space<vmem>>, %arg5: memref<128x128xf32, #tpu.memory_space<vmem>>, %arg6: memref<8x8x128xf32, #tpu.memory_space<vmem>>, %arg7: memref<8x128xf32, #tpu.memory_space<vmem>>, %arg8: memref<8x8x128xf32, #tpu.memory_space<vmem>>) attributes {dimension_semantics = [#tpu.dimension_semantics<parallel>, #tpu.dimension_semantics<arbitrary>], iteration_bounds = array<i64: 1, 1>, scalar_prefetch = 0 : i64, scratch_operands = 2 : i64, tpu.core_type = #tpu.core_type<tc>, window_params = [{transform_indices = @transform_0, window_bounds = array<i64: 8, 8, 128>}, {pipeline_mode = #tpu.pipeline_mode<synchronous>, transform_indices = @transform_1, window_bounds = array<i64: 128, 128>}, {pipeline_mode = #tpu.pipeline_mode<synchronous>, transform_indices = @transform_2, window_bounds = array<i64: 1, 128>}, {pipeline_mode = #tpu.pipeline_mode<synchronous>, transform_indices = @transform_3, window_bounds = array<i64: 128, 128>}, {transform_indices = @transform_4, window_bounds = array<i64: 8, 8, 128>}]} {
    %c0_i32 = arith.constant 0 : i32
    %0 = arith.cmpi eq, %arg1, %c0_i32 : i32
    %1 = arith.extui %0 : i1 to i32
    %c0_i32_0 = arith.constant 0 : i32
    %2 = arith.cmpi ne, %1, %c0_i32_0 : i32
    scf.if %2 {
      %cst_65 = arith.constant 0.000000e+00 : f32
      %103 = vector.broadcast %cst_65 : f32 to vector<8x128xf32>
      %c0_66 = arith.constant 0 : index
      %c0_67 = arith.constant 0 : index
      %104 = vector.load %arg7[%c0_66, %c0_67] : memref<8x128xf32, #tpu.memory_space<vmem>>, vector<8x128xf32>
      tpu.vector_store %arg7[%c0_66, %c0_67], %103 {strides = array<i32>} : memref<8x128xf32, #tpu.memory_space<vmem>>, vector<8x128xf32>,
    } else {
    }
    %c0 = arith.constant 0 : index
    %c0_1 = arith.constant 0 : index
    %c0_2 = arith.constant 0 : index
    %3 = vector.load %arg2[%c0, %c0_1, %c0_2] : memref<8x8x128xf32, #tpu.memory_space<vmem>>, vector<8x8x128xf32>
    %4 = vector.shape_cast %3 : vector<8x8x128xf32> to vector<64x128xf32>
    %c0_3 = arith.constant 0 : index
    %c0_4 = arith.constant 0 : index
    %5 = vector.load %arg3[%c0_3, %c0_4] : memref<128x128xf32, #tpu.memory_space<vmem>>, vector<128x128xf32>
    %cst = arith.constant dense<0.000000e+00> : vector<64x128xf32>
    %6 = tpu.matmul %4, %5, %cst {dimension_numbers = #tpu.dot_dimension_numbers<[1], [0], [0], [1], [0, 0, 1, 1], [], []>} : vector<64x128xf32>, vector<128x128xf32>, vector<64x128xf32> -> vector<64x128xf32>
    %c0_5 = arith.constant 0 : index
    %c0_6 = arith.constant 0 : index
    %7 = vector.load %arg4[%c0_5, %c0_6] : memref<1x128xf32, #tpu.memory_space<vmem>>, vector<1x128xf32>
    %8 = vector.broadcast %7 : vector<1x128xf32> to vector<64x128xf32>
    %9 = arith.addf %6, %8 : vector<64x128xf32>
    %10 = vector.shape_cast %9 : vector<64x128xf32> to vector<8x8x128xf32>
    %c0_7 = arith.constant 0 : index
    %c0_8 = arith.constant 0 : index
    %c0_9 = arith.constant 0 : index
    %11 = vector.load %arg8[%c0_7, %c0_8, %c0_9] : memref<8x8x128xf32, #tpu.memory_space<vmem>>, vector<8x8x128xf32>
    tpu.vector_store %arg8[%c0_7, %c0_8, %c0_9], %10 {strides = array<i32>} : memref<8x8x128xf32, #tpu.memory_space<vmem>>, vector<8x8x128xf32>,
    %c0_10 = arith.constant 0 : index
    %c0_11 = arith.constant 0 : index
    %12 = vector.load %arg5[%c0_10, %c0_11] : memref<128x128xf32, #tpu.memory_space<vmem>>, vector<128x128xf32>
    %c0_12 = arith.constant 0 : index
    %c0_13 = arith.constant 0 : index
    %13 = vector.load %arg7[%c0_12, %c0_13] : memref<8x128xf32, #tpu.memory_space<vmem>>, vector<8x128xf32>
    %c0_i32_14 = arith.constant 0 : i32
    %cst_15 = arith.constant dense<0.000000e+00> : vector<8x128xf32>
    %14 = tpu.matmul %13, %12, %cst_15 {dimension_numbers = #tpu.dot_dimension_numbers<[1], [0], [0], [1], [0, 0, 1, 1], [], []>} : vector<8x128xf32>, vector<128x128xf32>, vector<8x128xf32> -> vector<8x128xf32>
    %15 = arith.index_cast %c0_i32_14 : i32 to index
    %c0_16 = arith.constant 0 : index
    %c0_17 = arith.constant 0 : index
    %16 = vector.load %arg8[%15, %c0_16, %c0_17] : memref<8x8x128xf32, #tpu.memory_space<vmem>>, vector<1x8x128xf32>
    %17 = vector.shape_cast %16 : vector<1x8x128xf32> to vector<8x128xf32>
    %18 = arith.addf %17, %14 : vector<8x128xf32>
    %cst_18 = arith.constant 0.000000e+00 : f32
    %19 = vector.broadcast %cst_18 : f32 to vector<8x128xf32>
    %20 = arith.maximumf %18, %19 : vector<8x128xf32>
    %21 = arith.index_cast %c0_i32_14 : i32 to index
    %c0_19 = arith.constant 0 : index
    %c0_20 = arith.constant 0 : index
    %22 = vector.load %arg6[%21, %c0_19, %c0_20] : memref<8x8x128xf32, #tpu.memory_space<vmem>>, vector<1x8x128xf32>
    %23 = vector.shape_cast %22 : vector<1x8x128xf32> to vector<8x128xf32>
    %24 = vector.shape_cast %20 : vector<8x128xf32> to vector<1x8x128xf32>
    tpu.vector_store %arg6[%21, %c0_19, %c0_20], %24 {strides = array<i32>} : memref<8x8x128xf32, #tpu.memory_space<vmem>>, vector<1x8x128xf32>,
    %c1_i32 = arith.constant 1 : i32
    %cst_21 = arith.constant dense<0.000000e+00> : vector<8x128xf32>
    %25 = tpu.matmul %20, %12, %cst_21 {dimension_numbers = #tpu.dot_dimension_numbers<[1], [0], [0], [1], [0, 0, 1, 1], [], []>} : vector<8x128xf32>, vector<128x128xf32>, vector<8x128xf32> -> vector<8x128xf32>
    %26 = arith.index_cast %c1_i32 : i32 to index
    %c0_22 = arith.constant 0 : index
    %c0_23 = arith.constant 0 : index
    %27 = vector.load %arg8[%26, %c0_22, %c0_23] : memref<8x8x128xf32, #tpu.memory_space<vmem>>, vector<1x8x128xf32>
    %28 = vector.shape_cast %27 : vector<1x8x128xf32> to vector<8x128xf32>
    %29 = arith.addf %28, %25 : vector<8x128xf32>
    %cst_24 = arith.constant 0.000000e+00 : f32
    %30 = vector.broadcast %cst_24 : f32 to vector<8x128xf32>
    %31 = arith.maximumf %29, %30 : vector<8x128xf32>
    %32 = arith.index_cast %c1_i32 : i32 to index
    %c0_25 = arith.constant 0 : index
    %c0_26 = arith.constant 0 : index
    %33 = vector.load %arg6[%32, %c0_25, %c0_26] : memref<8x8x128xf32, #tpu.memory_space<vmem>>, vector<1x8x128xf32>
    %34 = vector.shape_cast %33 : vector<1x8x128xf32> to vector<8x128xf32>
    %35 = vector.shape_cast %31 : vector<8x128xf32> to vector<1x8x128xf32>
    tpu.vector_store %arg6[%32, %c0_25, %c0_26], %35 {strides = array<i32>} : memref<8x8x128xf32, #tpu.memory_space<vmem>>, vector<1x8x128xf32>,
    %c2_i32 = arith.constant 2 : i32
    %cst_27 = arith.constant dense<0.000000e+00> : vector<8x128xf32>
    %36 = tpu.matmul %31, %12, %cst_27 {dimension_numbers = #tpu.dot_dimension_numbers<[1], [0], [0], [1], [0, 0, 1, 1], [], []>} : vector<8x128xf32>, vector<128x128xf32>, vector<8x128xf32> -> vector<8x128xf32>
    %37 = arith.index_cast %c2_i32 : i32 to index
    %c0_28 = arith.constant 0 : index
    %c0_29 = arith.constant 0 : index
    %38 = vector.load %arg8[%37, %c0_28, %c0_29] : memref<8x8x128xf32, #tpu.memory_space<vmem>>, vector<1x8x128xf32>
    %39 = vector.shape_cast %38 : vector<1x8x128xf32> to vector<8x128xf32>
    %40 = arith.addf %39, %36 : vector<8x128xf32>
    %cst_30 = arith.constant 0.000000e+00 : f32
    %41 = vector.broadcast %cst_30 : f32 to vector<8x128xf32>
    %42 = arith.maximumf %40, %41 : vector<8x128xf32>
    %43 = arith.index_cast %c2_i32 : i32 to index
    %c0_31 = arith.constant 0 : index
    %c0_32 = arith.constant 0 : index
    %44 = vector.load %arg6[%43, %c0_31, %c0_32] : memref<8x8x128xf32, #tpu.memory_space<vmem>>, vector<1x8x128xf32>
    %45 = vector.shape_cast %44 : vector<1x8x128xf32> to vector<8x128xf32>
    %46 = vector.shape_cast %42 : vector<8x128xf32> to vector<1x8x128xf32>
    tpu.vector_store %arg6[%43, %c0_31, %c0_32], %46 {strides = array<i32>} : memref<8x8x128xf32, #tpu.memory_space<vmem>>, vector<1x8x128xf32>,
    %c3_i32 = arith.constant 3 : i32
    %cst_33 = arith.constant dense<0.000000e+00> : vector<8x128xf32>
    %47 = tpu.matmul %42, %12, %cst_33 {dimension_numbers = #tpu.dot_dimension_numbers<[1], [0], [0], [1], [0, 0, 1, 1], [], []>} : vector<8x128xf32>, vector<128x128xf32>, vector<8x128xf32> -> vector<8x128xf32>
    %48 = arith.index_cast %c3_i32 : i32 to index
    %c0_34 = arith.constant 0 : index
    %c0_35 = arith.constant 0 : index
    %49 = vector.load %arg8[%48, %c0_34, %c0_35] : memref<8x8x128xf32, #tpu.memory_space<vmem>>, vector<1x8x128xf32>
    %50 = vector.shape_cast %49 : vector<1x8x128xf32> to vector<8x128xf32>
    %51 = arith.addf %50, %47 : vector<8x128xf32>
    %cst_36 = arith.constant 0.000000e+00 : f32
    %52 = vector.broadcast %cst_36 : f32 to vector<8x128xf32>
    %53 = arith.maximumf %51, %52 : vector<8x128xf32>
    %54 = arith.index_cast %c3_i32 : i32 to index
    %c0_37 = arith.constant 0 : index
    %c0_38 = arith.constant 0 : index
    %55 = vector.load %arg6[%54, %c0_37, %c0_38] : memref<8x8x128xf32, #tpu.memory_space<vmem>>, vector<1x8x128xf32>
    %56 = vector.shape_cast %55 : vector<1x8x128xf32> to vector<8x128xf32>
    %57 = vector.shape_cast %53 : vector<8x128xf32> to vector<1x8x128xf32>
    tpu.vector_store %arg6[%54, %c0_37, %c0_38], %57 {strides = array<i32>} : memref<8x8x128xf32, #tpu.memory_space<vmem>>, vector<1x8x128xf32>,
    %c4_i32 = arith.constant 4 : i32
    %cst_39 = arith.constant dense<0.000000e+00> : vector<8x128xf32>
    %58 = tpu.matmul %53, %12, %cst_39 {dimension_numbers = #tpu.dot_dimension_numbers<[1], [0], [0], [1], [0, 0, 1, 1], [], []>} : vector<8x128xf32>, vector<128x128xf32>, vector<8x128xf32> -> vector<8x128xf32>
    %59 = arith.index_cast %c4_i32 : i32 to index
    %c0_40 = arith.constant 0 : index
    %c0_41 = arith.constant 0 : index
    %60 = vector.load %arg8[%59, %c0_40, %c0_41] : memref<8x8x128xf32, #tpu.memory_space<vmem>>, vector<1x8x128xf32>
    %61 = vector.shape_cast %60 : vector<1x8x128xf32> to vector<8x128xf32>
    %62 = arith.addf %61, %58 : vector<8x128xf32>
    %cst_42 = arith.constant 0.000000e+00 : f32
    %63 = vector.broadcast %cst_42 : f32 to vector<8x128xf32>
    %64 = arith.maximumf %62, %63 : vector<8x128xf32>
    %65 = arith.index_cast %c4_i32 : i32 to index
    %c0_43 = arith.constant 0 : index
    %c0_44 = arith.constant 0 : index
    %66 = vector.load %arg6[%65, %c0_43, %c0_44] : memref<8x8x128xf32, #tpu.memory_space<vmem>>, vector<1x8x128xf32>
    %67 = vector.shape_cast %66 : vector<1x8x128xf32> to vector<8x128xf32>
    %68 = vector.shape_cast %64 : vector<8x128xf32> to vector<1x8x128xf32>
    tpu.vector_store %arg6[%65, %c0_43, %c0_44], %68 {strides = array<i32>} : memref<8x8x128xf32, #tpu.memory_space<vmem>>, vector<1x8x128xf32>,
    %c5_i32 = arith.constant 5 : i32
    %cst_45 = arith.constant dense<0.000000e+00> : vector<8x128xf32>
    %69 = tpu.matmul %64, %12, %cst_45 {dimension_numbers = #tpu.dot_dimension_numbers<[1], [0], [0], [1], [0, 0, 1, 1], [], []>} : vector<8x128xf32>, vector<128x128xf32>, vector<8x128xf32> -> vector<8x128xf32>
    %70 = arith.index_cast %c5_i32 : i32 to index
    %c0_46 = arith.constant 0 : index
    %c0_47 = arith.constant 0 : index
    %71 = vector.load %arg8[%70, %c0_46, %c0_47] : memref<8x8x128xf32, #tpu.memory_space<vmem>>, vector<1x8x128xf32>
    %72 = vector.shape_cast %71 : vector<1x8x128xf32> to vector<8x128xf32>
    %73 = arith.addf %72, %69 : vector<8x128xf32>
    %cst_48 = arith.constant 0.000000e+00 : f32
    %74 = vector.broadcast %cst_48 : f32 to vector<8x128xf32>
    %75 = arith.maximumf %73, %74 : vector<8x128xf32>
    %76 = arith.index_cast %c5_i32 : i32 to index
    %c0_49 = arith.constant 0 : index
    %c0_50 = arith.constant 0 : index
    %77 = vector.load %arg6[%76, %c0_49, %c0_50] : memref<8x8x128xf32, #tpu.memory_space<vmem>>, vector<1x8x128xf32>
    %78 = vector.shape_cast %77 : vector<1x8x128xf32> to vector<8x128xf32>
    %79 = vector.shape_cast %75 : vector<8x128xf32> to vector<1x8x128xf32>
    tpu.vector_store %arg6[%76, %c0_49, %c0_50], %79 {strides = array<i32>} : memref<8x8x128xf32, #tpu.memory_space<vmem>>, vector<1x8x128xf32>,
    %c6_i32 = arith.constant 6 : i32
    %cst_51 = arith.constant dense<0.000000e+00> : vector<8x128xf32>
    %80 = tpu.matmul %75, %12, %cst_51 {dimension_numbers = #tpu.dot_dimension_numbers<[1], [0], [0], [1], [0, 0, 1, 1], [], []>} : vector<8x128xf32>, vector<128x128xf32>, vector<8x128xf32> -> vector<8x128xf32>
    %81 = arith.index_cast %c6_i32 : i32 to index
    %c0_52 = arith.constant 0 : index
    %c0_53 = arith.constant 0 : index
    %82 = vector.load %arg8[%81, %c0_52, %c0_53] : memref<8x8x128xf32, #tpu.memory_space<vmem>>, vector<1x8x128xf32>
    %83 = vector.shape_cast %82 : vector<1x8x128xf32> to vector<8x128xf32>
    %84 = arith.addf %83, %80 : vector<8x128xf32>
    %cst_54 = arith.constant 0.000000e+00 : f32
    %85 = vector.broadcast %cst_54 : f32 to vector<8x128xf32>
    %86 = arith.maximumf %84, %85 : vector<8x128xf32>
    %87 = arith.index_cast %c6_i32 : i32 to index
    %c0_55 = arith.constant 0 : index
    %c0_56 = arith.constant 0 : index
    %88 = vector.load %arg6[%87, %c0_55, %c0_56] : memref<8x8x128xf32, #tpu.memory_space<vmem>>, vector<1x8x128xf32>
    %89 = vector.shape_cast %88 : vector<1x8x128xf32> to vector<8x128xf32>
    %90 = vector.shape_cast %86 : vector<8x128xf32> to vector<1x8x128xf32>
    tpu.vector_store %arg6[%87, %c0_55, %c0_56], %90 {strides = array<i32>} : memref<8x8x128xf32, #tpu.memory_space<vmem>>, vector<1x8x128xf32>,
    %c7_i32 = arith.constant 7 : i32
    %cst_57 = arith.constant dense<0.000000e+00> : vector<8x128xf32>
    %91 = tpu.matmul %86, %12, %cst_57 {dimension_numbers = #tpu.dot_dimension_numbers<[1], [0], [0], [1], [0, 0, 1, 1], [], []>} : vector<8x128xf32>, vector<128x128xf32>, vector<8x128xf32> -> vector<8x128xf32>
    %92 = arith.index_cast %c7_i32 : i32 to index
    %c0_58 = arith.constant 0 : index
    %c0_59 = arith.constant 0 : index
    %93 = vector.load %arg8[%92, %c0_58, %c0_59] : memref<8x8x128xf32, #tpu.memory_space<vmem>>, vector<1x8x128xf32>
    %94 = vector.shape_cast %93 : vector<1x8x128xf32> to vector<8x128xf32>
    %95 = arith.addf %94, %91 : vector<8x128xf32>
    %cst_60 = arith.constant 0.000000e+00 : f32
    %96 = vector.broadcast %cst_60 : f32 to vector<8x128xf32>
    %97 = arith.maximumf %95, %96 : vector<8x128xf32>
    %98 = arith.index_cast %c7_i32 : i32 to index
    %c0_61 = arith.constant 0 : index
    %c0_62 = arith.constant 0 : index
    %99 = vector.load %arg6[%98, %c0_61, %c0_62] : memref<8x8x128xf32, #tpu.memory_space<vmem>>, vector<1x8x128xf32>
    %100 = vector.shape_cast %99 : vector<1x8x128xf32> to vector<8x128xf32>
    %101 = vector.shape_cast %97 : vector<8x128xf32> to vector<1x8x128xf32>
    tpu.vector_store %arg6[%98, %c0_61, %c0_62], %101 {strides = array<i32>} : memref<8x8x128xf32, #tpu.memory_space<vmem>>, vector<1x8x128xf32>,
    %c8_i32 = arith.constant 8 : i32
    %c0_63 = arith.constant 0 : index
    %c0_64 = arith.constant 0 : index
    %102 = vector.load %arg7[%c0_63, %c0_64] : memref<8x128xf32, #tpu.memory_space<vmem>>, vector<8x128xf32>
    tpu.vector_store %arg7[%c0_63, %c0_64], %97 {strides = array<i32>} : memref<8x128xf32, #tpu.memory_space<vmem>>, vector<8x128xf32>,
    return
  }
  func.func @transform_0(%arg0: i32, %arg1: i32) -> (i32, i32, i32) {
    %c0_i32 = arith.constant 0 : i32
    %c0_i32_0 = arith.constant 0 : i32
    return %arg1, %arg0, %c0_i32 : i32, i32, i32
  }
  func.func @transform_1(%arg0: i32, %arg1: i32) -> (i32, i32) {
    %c0_i32 = arith.constant 0 : i32
    %c0_i32_0 = arith.constant 0 : i32
    %c0_i32_1 = arith.constant 0 : i32
    return %c0_i32, %c0_i32_0 : i32, i32
  }
  func.func @transform_2(%arg0: i32, %arg1: i32) -> (i32, i32) {
    %c0_i32 = arith.constant 0 : i32
    %c0_i32_0 = arith.constant 0 : i32
    %c0_i32_1 = arith.constant 0 : i32
    return %c0_i32, %c0_i32_0 : i32, i32
  }
  func.func @transform_3(%arg0: i32, %arg1: i32) -> (i32, i32) {
    %c0_i32 = arith.constant 0 : i32
    %c0_i32_0 = arith.constant 0 : i32
    %c0_i32_1 = arith.constant 0 : i32
    return %c0_i32, %c0_i32_0 : i32, i32
  }
  func.func @transform_4(%arg0: i32, %arg1: i32) -> (i32, i32, i32) {
    %c0_i32 = arith.constant 0 : i32
    %c0_i32_0 = arith.constant 0 : i32
    return %arg1, %arg0, %c0_i32 : i32, i32, i32
  }
}

</mosaic_0001>

<llo_original>
// kernel: tpu_custom_call.1
$region0: #{tpu_custom_call.1}
  #allocation0 [shape = 'u32[]', space=smem, size = 0x4, offset = 0x4, fixed_abs, tag = 'smem constant byte address 0x4 - core index']
  #allocation1 [shape = 'u32[72,128]{1,0:T(1,128)}', space=vmem, size = 0x9000, scoped, tag = 'internal scratch']
  #allocation2 [shape = 'f32[8,128]{1,0:T(8,128)}', space=vmem, size = 0x1000, scoped, tag = 'scratch operand']
  #allocation3 [shape = 'f32[8,8,128]{2,1,0:T(8,128)}', space=vmem, size = 0x8000, scoped, tag = 'scratch operand']
  %s0 = inlined_call_operand.hbm [shape: f32[8,8,128], index: 0, kind: input, shape index: {}]
  %s1 = inlined_call_operand.hbm [shape: f32[128,128], index: 1, kind: input, shape index: {}]
  %s2 = inlined_call_operand.vmem [shape: f32[1,128], index: 2, kind: input, shape index: {}]
  %s3 = inlined_call_operand.hbm [shape: f32[128,128], index: 3, kind: input, shape index: {}]
  %s4 = inlined_call_operand.hbm [shape: f32[8,8,128], index: 4, kind: output, shape index: {}]
  %s5 = sld [smem:[#allocation0]]
  $region42: #{tpu_custom_call.1} parent=0
    _
  %s7 = ssub.s32 1, %s5
  %s8 = scalar_select 0, %s7, %s5
  $region1: #{tpu_custom_call.1} parent=0
    #allocation4 [shape = 'u8[32768]{0}', space=vmem, size = 0x8000, scoped, tag = 'input window, operand 0, single buffered']
    #allocation5 [shape = 's32[1]{0}', space=sflag, size = 0x4, scoped, tag = 'scoped memory for tpu_custom_call.1']
    #allocation6 [shape = 's32[1]{0}', space=sflag, size = 0x4, scoped, tag = 'scoped memory for tpu_custom_call.1']
    #allocation7 [shape = 'u8[65536]{0}', space=vmem, size = 0x10000, scoped, tag = 'input window, operand 1, single buffered']
    #allocation8 [shape = 's32[1]{0}', space=sflag, size = 0x4, scoped, tag = 'scoped memory for tpu_custom_call.1']
    #allocation9 [shape = 'u8[65536]{0}', space=vmem, size = 0x10000, scoped, tag = 'input window, operand 3, single buffered']
    #allocation10 [shape = 'u8[32768]{0}', space=vmem, size = 0x8000, scoped, tag = 'output window, operand 0, single buffered']
    %9 = vsyncpa [#allocation5], 0
    %10 = vsyncpa [#allocation8], 0
    %11 = vsyncpa [#allocation6], 0
    // Predicated region
    $region2: #{tpu_custom_call.1} parent=1 // pred_check
      _
    $region3: #{tpu_custom_call.1} parent=1 // pred_check_branch
      %13 = sbr.rel (0) target = $region5
    $region4: #{tpu_custom_call.1} parent=1 // pred_region
      %15 = vsyncadd [#allocation5], 0
      %s16 = sshll.u32 %s0, 4
      %s17 = int_to_ptr.hbm [resolvable:$true] %s16
      %s18 = sshll.u32 [#allocation4], 4
      %s19 = int_to_ptr.vmem [resolvable:$true] %s18
      %24 = dma.hbm_to_vmem [thread:$0]  %s17, 1024, %s19, [#allocation5], 128, 128, 8
    $region5: #{tpu_custom_call.1} parent=1 // pred_fallthru
      _
    // Predicated region
    $region6: #{tpu_custom_call.1} parent=1 // pred_check
      _
    $region7: #{tpu_custom_call.1} parent=1 // pred_check_branch
      %26 = sbr.rel (0) target = $region9
    $region8: #{tpu_custom_call.1} parent=1 // pred_region
      %28 = vsyncadd [#allocation8], 0
      %s29 = sshll.u32 %s1, 4
      %s30 = int_to_ptr.hbm [resolvable:$true] %s29
      %s31 = sshll.u32 [#allocation7], 4
      %s32 = int_to_ptr.vmem [resolvable:$true] %s31
      %37 = dma.hbm_to_vmem [thread:$0]  %s30, 2048, %s32, [#allocation8], 128, 128, 8
    $region9: #{tpu_custom_call.1} parent=1 // pred_fallthru
      _
    // Predicated region
    $region10: #{tpu_custom_call.1} parent=1 // pred_check
      _
    $region11: #{tpu_custom_call.1} parent=1 // pred_check_branch
      %39 = sbr.rel (0) target = $region13
    $region12: #{tpu_custom_call.1} parent=1 // pred_region
      _
    $region13: #{tpu_custom_call.1} parent=1 // pred_fallthru
      _
    // Predicated region
    $region14: #{tpu_custom_call.1} parent=1 // pred_check
      _
    $region15: #{tpu_custom_call.1} parent=1 // pred_check_branch
      %41 = sbr.rel (0) target = $region17
    $region16: #{tpu_custom_call.1} parent=1 // pred_region
      %43 = vsyncadd [#allocation8], 0
      %s44 = sshll.u32 %s3, 4
      %s45 = int_to_ptr.hbm [resolvable:$true] %s44
      %s46 = sshll.u32 [#allocation9], 4
      %s47 = int_to_ptr.vmem [resolvable:$true] %s46
      %52 = dma.hbm_to_vmem [thread:$0]  %s45, 2048, %s47, [#allocation8], 128, 128, 8
    $region17: #{tpu_custom_call.1} parent=1 // pred_fallthru
      _
    // Predicated region
    $region18: #{tpu_custom_call.1} parent=1 // pred_check
      _
    $region19: #{tpu_custom_call.1} parent=1 // pred_check_branch
      %54 = sbr.rel (0) target = $region21
    $region20: #{tpu_custom_call.1} parent=1 // pred_region
      %56 = dma.done [#allocation5], 1024
    $region21: #{tpu_custom_call.1} parent=1 // pred_fallthru
      _
    // Predicated region
    $region22: #{tpu_custom_call.1} parent=1 // pred_check
      _
    $region23: #{tpu_custom_call.1} parent=1 // pred_check_branch
      %58 = sbr.rel (0) target = $region25
    $region24: #{tpu_custom_call.1} parent=1 // pred_region
      %60 = dma.done [#allocation8], 2048
    $region25: #{tpu_custom_call.1} parent=1 // pred_fallthru
      _
    // Predicated region
    $region26: #{tpu_custom_call.1} parent=1 // pred_check
      _
    $region27: #{tpu_custom_call.1} parent=1 // pred_check_branch
      %62 = sbr.rel (0) target = $region29
    $region28: #{tpu_custom_call.1} parent=1 // pred_region
      %64 = dma.done [#allocation8], 2048
    $region29: #{tpu_custom_call.1} parent=1 // pred_fallthru
      _
    %p65 = scmp.eq.s32.totalorder 0, 0
    // Predicated region
    $region30: #{tpu_custom_call.1} parent=1 // pred_check
      %p66 = pneg %p65
    $region31: #{tpu_custom_call.1} parent=1 // pred_check_branch
      %68 = sbr.rel (%p66) target = $region33
    $region32: #{tpu_custom_call.1} parent=1 // pred_region
      %69 = vst [vmem:[#allocation2] sm:$0xff] 0.0
    $region33: #{tpu_custom_call.1} parent=1 // pred_fallthru
      _
    %v70 = vld [vmem:[#allocation4] sm:$0xff]
    %v71 = vld [vmem:[#allocation4 + $0x8] sm:$0xff]
    %v72 = vld [vmem:[#allocation4 + $0x10] sm:$0xff]
    %v73 = vld [vmem:[#allocation4 + $0x18] sm:$0xff]
    %v74 = vld [vmem:[#allocation4 + $0x20] sm:$0xff]
    %v75 = vld [vmem:[#allocation4 + $0x28] sm:$0xff]
    %v76 = vld [vmem:[#allocation4 + $0x30] sm:$0xff]
    %v77 = vld [vmem:[#allocation4 + $0x38] sm:$0xff]
    %v78 = vld [vmem:[#allocation7] sm:$0xff]
    %v79 = vld [vmem:[#allocation7 + $0x8] sm:$0xff]
    %v80 = vld [vmem:[#allocation7 + $0x10] sm:$0xff]
    %v81 = vld [vmem:[#allocation7 + $0x18] sm:$0xff]
    %v82 = vld [vmem:[#allocation7 + $0x20] sm:$0xff]
    %v83 = vld [vmem:[#allocation7 + $0x28] sm:$0xff]
    %v84 = vld [vmem:[#allocation7 + $0x30] sm:$0xff]
    %v85 = vld [vmem:[#allocation7 + $0x38] sm:$0xff]
    %v86 = vld [vmem:[#allocation7 + $0x40] sm:$0xff]
    %v87 = vld [vmem:[#allocation7 + $0x48] sm:$0xff]
    %v88 = vld [vmem:[#allocation7 + $0x50] sm:$0xff]
    %v89 = vld [vmem:[#allocation7 + $0x58] sm:$0xff]
    %v90 = vld [vmem:[#allocation7 + $0x60] sm:$0xff]
    %v91 = vld [vmem:[#allocation7 + $0x68] sm:$0xff]
    %v92 = vld [vmem:[#allocation7 + $0x70] sm:$0xff]
    %v93 = vld [vmem:[#allocation7 + $0x78] sm:$0xff]
    %v94 = vld [vmem:[%s2] sm:$0x1]
    %v96 = vperm.slane %v94, 0
    %98 = vmatpush.msra.mxu0 %v93
    %99 = vmatpush.msra.mxu0 %v92
    %100 = vmatpush.msra.mxu0 %v91
    %101 = vmatpush.msra.mxu0 %v90
    %102 = vmatpush.msra.mxu0 %v89
    %103 = vmatpush.msra.mxu0 %v88
    %104 = vmatpush.msra.mxu0 %v87
    %105 = vmatpush.msra.mxu0 %v86
    %106 = vmatpush.msra.mxu0 %v85
    %107 = vmatpush.msra.mxu0 %v84
    %108 = vmatpush.msra.mxu0 %v83
    %109 = vmatpush.msra.mxu0 %v82
    %110 = vmatpush.msra.mxu0 %v81
    %111 = vmatpush.msra.mxu0 %v80
    %112 = vmatpush.msra.mxu0 %v79
    %113 = vmatpush.msra.mxu0 %v78
    %114 = vmatmul.f32.gmra.mxu0 %v70
    %v115 = vpop.f32.mrf.mxu0
    %v116 = vadd.f32 %v96, %v115
    %117 = vmatmul.f32.gmra.mxu0 %v71
    %v118 = vpop.f32.mrf.mxu0
    %v119 = vadd.f32 %v96, %v118
    %120 = vmatmul.f32.gmra.mxu0 %v72
    %v121 = vpop.f32.mrf.mxu0
    %v122 = vadd.f32 %v96, %v121
    %123 = vmatmul.f32.gmra.mxu0 %v73
    %v124 = vpop.f32.mrf.mxu0
    %v125 = vadd.f32 %v96, %v124
    %126 = vmatmul.f32.gmra.mxu0 %v74
    %v127 = vpop.f32.mrf.mxu0
    %v128 = vadd.f32 %v96, %v127
    %129 = vmatmul.f32.gmra.mxu0 %v75
    %v130 = vpop.f32.mrf.mxu0
    %v131 = vadd.f32 %v96, %v130
    %132 = vmatmul.f32.gmra.mxu0 %v76
    %v133 = vpop.f32.mrf.mxu0
    %v134 = vadd.f32 %v96, %v133
    %135 = vmatmul.f32.gmra.mxu0 %v77
    %v136 = vpop.f32.mrf.mxu0
    %v137 = vadd.f32 %v96, %v136
    %138 = vdwg.mxu0
    %139 = vst [vmem:[#allocation3] sm:$0xff] %v116
    %140 = vst [vmem:[#allocation3 + $0x8] sm:$0xff] %v119
    %141 = vst [vmem:[#allocation3 + $0x10] sm:$0xff] %v122
    %142 = vst [vmem:[#allocation3 + $0x18] sm:$0xff] %v125
    %143 = vst [vmem:[#allocation3 + $0x20] sm:$0xff] %v128
    %144 = vst [vmem:[#allocation3 + $0x28] sm:$0xff] %v131
    %145 = vst [vmem:[#allocation3 + $0x30] sm:$0xff] %v134
    %146 = vst [vmem:[#allocation3 + $0x38] sm:$0xff] %v137
    %v147 = vld [vmem:[#allocation9] sm:$0xff]
    %v148 = vld [vmem:[#allocation9 + $0x8] sm:$0xff]
    %v149 = vld [vmem:[#allocation9 + $0x10] sm:$0xff]
    %v150 = vld [vmem:[#allocation9 + $0x18] sm:$0xff]
    %v151 = vld [vmem:[#allocation9 + $0x20] sm:$0xff]
    %v152 = vld [vmem:[#allocation9 + $0x28] sm:$0xff]
    %v153 = vld [vmem:[#allocation9 + $0x30] sm:$0xff]
    %v154 = vld [vmem:[#allocation9 + $0x38] sm:$0xff]
    %v155 = vld [vmem:[#allocation9 + $0x40] sm:$0xff]
    %v156 = vld [vmem:[#allocation9 + $0x48] sm:$0xff]
    %v157 = vld [vmem:[#allocation9 + $0x50] sm:$0xff]
    %v158 = vld [vmem:[#allocation9 + $0x58] sm:$0xff]
    %v159 = vld [vmem:[#allocation9 + $0x60] sm:$0xff]
    %v160 = vld [vmem:[#allocation9 + $0x68] sm:$0xff]
    %v161 = vld [vmem:[#allocation9 + $0x70] sm:$0xff]
    %v162 = vld [vmem:[#allocation9 + $0x78] sm:$0xff]
    %v163 = vld [vmem:[#allocation2] sm:$0xff]
    %164 = vmatpush.msra.mxu0 %v162
    %165 = vmatpush.msra.mxu0 %v161
    %166 = vmatpush.msra.mxu0 %v160
    %167 = vmatpush.msra.mxu0 %v159
    %168 = vmatpush.msra.mxu0 %v158
    %169 = vmatpush.msra.mxu0 %v157
    %170 = vmatpush.msra.mxu0 %v156
    %171 = vmatpush.msra.mxu0 %v155
    %172 = vmatpush.msra.mxu0 %v154
    %173 = vmatpush.msra.mxu0 %v153
    %174 = vmatpush.msra.mxu0 %v152
    %175 = vmatpush.msra.mxu0 %v151
    %176 = vmatpush.msra.mxu0 %v150
    %177 = vmatpush.msra.mxu0 %v149
    %178 = vmatpush.msra.mxu0 %v148
    %179 = vmatpush.msra.mxu0 %v147
    %180 = vmatmul.f32.gmra.mxu0 %v163
    %v181 = vpop.f32.mrf.mxu0
    %v182 = vadd.f32 0.0, %v181
    %183 = vdwg.mxu0
    %v184 = vld [vmem:[#allocation3] sm:$0xff]
    %v185 = vadd.f32 %v184, %v182
    %v186 = vmax.f32 %v185, 0.0
    %187 = vst [vmem:[#allocation10] sm:$0xff] %v186
    %188 = vmatpush.msra.mxu0 %v162
    %189 = vmatpush.msra.mxu0 %v161
    %190 = vmatpush.msra.mxu0 %v160
    %191 = vmatpush.msra.mxu0 %v159
    %192 = vmatpush.msra.mxu0 %v158
    %193 = vmatpush.msra.mxu0 %v157
    %194 = vmatpush.msra.mxu0 %v156
    %195 = vmatpush.msra.mxu0 %v155
    %196 = vmatpush.msra.mxu0 %v154
    %197 = vmatpush.msra.mxu0 %v153
    %198 = vmatpush.msra.mxu0 %v152
    %199 = vmatpush.msra.mxu0 %v151
    %200 = vmatpush.msra.mxu0 %v150
    %201 = vmatpush.msra.mxu0 %v149
    %202 = vmatpush.msra.mxu0 %v148
    %203 = vmatpush.msra.mxu0 %v147
    %204 = vmatmul.f32.gmra.mxu0 %v186
    %v205 = vpop.f32.mrf.mxu0
    %v206 = vadd.f32 0.0, %v205
    %207 = vdwg.mxu0
    %s208 = scalar_lea.vmem [#allocation3], 8
    %v209 = vld [vmem:[%s208] sm:$0xff]
    %v210 = vadd.f32 %v209, %v206
    %v211 = vmax.f32 %v210, 0.0
    %s212 = scalar_lea.vmem [#allocation10], 8
    %213 = vst [vmem:[%s212] sm:$0xff] %v211
    %214 = vmatpush.msra.mxu0 %v162
    %215 = vmatpush.msra.mxu0 %v161
    %216 = vmatpush.msra.mxu0 %v160
    %217 = vmatpush.msra.mxu0 %v159
    %218 = vmatpush.msra.mxu0 %v158
    %219 = vmatpush.msra.mxu0 %v157
    %220 = vmatpush.msra.mxu0 %v156
    %221 = vmatpush.msra.mxu0 %v155
    %222 = vmatpush.msra.mxu0 %v154
    %223 = vmatpush.msra.mxu0 %v153
    %224 = vmatpush.msra.mxu0 %v152
    %225 = vmatpush.msra.mxu0 %v151
    %226 = vmatpush.msra.mxu0 %v150
    %227 = vmatpush.msra.mxu0 %v149
    %228 = vmatpush.msra.mxu0 %v148
    %229 = vmatpush.msra.mxu0 %v147
    %230 = vmatmul.f32.gmra.mxu0 %v211
    %v231 = vpop.f32.mrf.mxu0
    %v232 = vadd.f32 0.0, %v231
    %233 = vdwg.mxu0
    %s234 = scalar_lea.vmem [#allocation3], 16
    %v235 = vld [vmem:[%s234] sm:$0xff]
    %v236 = vadd.f32 %v235, %v232
    %v237 = vmax.f32 %v236, 0.0
    %s238 = scalar_lea.vmem [#allocation10], 16
    %239 = vst [vmem:[%s238] sm:$0xff] %v237
    %240 = vmatpush.msra.mxu0 %v162
    %241 = vmatpush.msra.mxu0 %v161
    %242 = vmatpush.msra.mxu0 %v160
    %243 = vmatpush.msra.mxu0 %v159
    %244 = vmatpush.msra.mxu0 %v158
    %245 = vmatpush.msra.mxu0 %v157
    %246 = vmatpush.msra.mxu0 %v156
    %247 = vmatpush.msra.mxu0 %v155
    %248 = vmatpush.msra.mxu0 %v154
    %249 = vmatpush.msra.mxu0 %v153
    %250 = vmatpush.msra.mxu0 %v152
    %251 = vmatpush.msra.mxu0 %v151
    %252 = vmatpush.msra.mxu0 %v150
    %253 = vmatpush.msra.mxu0 %v149
    %254 = vmatpush.msra.mxu0 %v148
    %255 = vmatpush.msra.mxu0 %v147
    %256 = vmatmul.f32.gmra.mxu0 %v237
    %v257 = vpop.f32.mrf.mxu0
    %v258 = vadd.f32 0.0, %v257
    %259 = vdwg.mxu0
    %s260 = scalar_lea.vmem [#allocation3], 24
    %v261 = vld [vmem:[%s260] sm:$0xff]
    %v262 = vadd.f32 %v261, %v258
    %v263 = vmax.f32 %v262, 0.0
    %s264 = scalar_lea.vmem [#allocation10], 24
    %265 = vst [vmem:[%s264] sm:$0xff] %v263
    %266 = vmatpush.msra.mxu0 %v162
    %267 = vmatpush.msra.mxu0 %v161
    %268 = vmatpush.msra.mxu0 %v160
    %269 = vmatpush.msra.mxu0 %v159
    %270 = vmatpush.msra.mxu0 %v158
    %271 = vmatpush.msra.mxu0 %v157
    %272 = vmatpush.msra.mxu0 %v156
    %273 = vmatpush.msra.mxu0 %v155
    %274 = vmatpush.msra.mxu0 %v154
    %275 = vmatpush.msra.mxu0 %v153
    %276 = vmatpush.msra.mxu0 %v152
    %277 = vmatpush.msra.mxu0 %v151
    %278 = vmatpush.msra.mxu0 %v150
    %279 = vmatpush.msra.mxu0 %v149
    %280 = vmatpush.msra.mxu0 %v148
    %281 = vmatpush.msra.mxu0 %v147
    %282 = vmatmul.f32.gmra.mxu0 %v263
    %v283 = vpop.f32.mrf.mxu0
    %v284 = vadd.f32 0.0, %v283
    %285 = vdwg.mxu0
    %s286 = scalar_lea.vmem [#allocation3], 32
    %v287 = vld [vmem:[%s286] sm:$0xff]
    %v288 = vadd.f32 %v287, %v284
    %v289 = vmax.f32 %v288, 0.0
    %s290 = scalar_lea.vmem [#allocation10], 32
    %291 = vst [vmem:[%s290] sm:$0xff] %v289
    %292 = vmatpush.msra.mxu0 %v162
    %293 = vmatpush.msra.mxu0 %v161
    %294 = vmatpush.msra.mxu0 %v160
    %295 = vmatpush.msra.mxu0 %v159
    %296 = vmatpush.msra.mxu0 %v158
    %297 = vmatpush.msra.mxu0 %v157
    %298 = vmatpush.msra.mxu0 %v156
    %299 = vmatpush.msra.mxu0 %v155
    %300 = vmatpush.msra.mxu0 %v154
    %301 = vmatpush.msra.mxu0 %v153
    %302 = vmatpush.msra.mxu0 %v152
    %303 = vmatpush.msra.mxu0 %v151
    %304 = vmatpush.msra.mxu0 %v150
    %305 = vmatpush.msra.mxu0 %v149
    %306 = vmatpush.msra.mxu0 %v148
    %307 = vmatpush.msra.mxu0 %v147
    %308 = vmatmul.f32.gmra.mxu0 %v289
    %v309 = vpop.f32.mrf.mxu0
    %v310 = vadd.f32 0.0, %v309
    %311 = vdwg.mxu0
    %s312 = scalar_lea.vmem [#allocation3], 40
    %v313 = vld [vmem:[%s312] sm:$0xff]
    %v314 = vadd.f32 %v313, %v310
    %v315 = vmax.f32 %v314, 0.0
    %s316 = scalar_lea.vmem [#allocation10], 40
    %317 = vst [vmem:[%s316] sm:$0xff] %v315
    %318 = vmatpush.msra.mxu0 %v162
    %319 = vmatpush.msra.mxu0 %v161
    %320 = vmatpush.msra.mxu0 %v160
    %321 = vmatpush.msra.mxu0 %v159
    %322 = vmatpush.msra.mxu0 %v158
    %323 = vmatpush.msra.mxu0 %v157
    %324 = vmatpush.msra.mxu0 %v156
    %325 = vmatpush.msra.mxu0 %v155
    %326 = vmatpush.msra.mxu0 %v154
    %327 = vmatpush.msra.mxu0 %v153
    %328 = vmatpush.msra.mxu0 %v152
    %329 = vmatpush.msra.mxu0 %v151
    %330 = vmatpush.msra.mxu0 %v150
    %331 = vmatpush.msra.mxu0 %v149
    %332 = vmatpush.msra.mxu0 %v148
    %333 = vmatpush.msra.mxu0 %v147
    %334 = vmatmul.f32.gmra.mxu0 %v315
    %v335 = vpop.f32.mrf.mxu0
    %v336 = vadd.f32 0.0, %v335
    %337 = vdwg.mxu0
    %s338 = scalar_lea.vmem [#allocation3], 48
    %v339 = vld [vmem:[%s338] sm:$0xff]
    %v340 = vadd.f32 %v339, %v336
    %v341 = vmax.f32 %v340, 0.0
    %s342 = scalar_lea.vmem [#allocation10], 48
    %343 = vst [vmem:[%s342] sm:$0xff] %v341
    %344 = vmatpush.msra.mxu0 %v162
    %345 = vmatpush.msra.mxu0 %v161
    %346 = vmatpush.msra.mxu0 %v160
    %347 = vmatpush.msra.mxu0 %v159
    %348 = vmatpush.msra.mxu0 %v158
    %349 = vmatpush.msra.mxu0 %v157
    %350 = vmatpush.msra.mxu0 %v156
    %351 = vmatpush.msra.mxu0 %v155
    %352 = vmatpush.msra.mxu0 %v154
    %353 = vmatpush.msra.mxu0 %v153
    %354 = vmatpush.msra.mxu0 %v152
    %355 = vmatpush.msra.mxu0 %v151
    %356 = vmatpush.msra.mxu0 %v150
    %357 = vmatpush.msra.mxu0 %v149
    %358 = vmatpush.msra.mxu0 %v148
    %359 = vmatpush.msra.mxu0 %v147
    %360 = vmatmul.f32.gmra.mxu0 %v341
    %v361 = vpop.f32.mrf.mxu0
    %v362 = vadd.f32 0.0, %v361
    %363 = vdwg.mxu0
    %s364 = scalar_lea.vmem [#allocation3], 56
    %v365 = vld [vmem:[%s364] sm:$0xff]
    %v366 = vadd.f32 %v365, %v362
    %v367 = vmax.f32 %v366, 0.0
    %s368 = scalar_lea.vmem [#allocation10], 56
    %369 = vst [vmem:[%s368] sm:$0xff] %v367
    %370 = vst [vmem:[#allocation2] sm:$0xff] %v367
    // Predicated region
    $region34: #{tpu_custom_call.1} parent=1 // pred_check
      _
    $region35: #{tpu_custom_call.1} parent=1 // pred_check_branch
      %372 = sbr.rel (0) target = $region37
    $region36: #{tpu_custom_call.1} parent=1 // pred_region
      %374 = vsyncadd [#allocation6], 0
      %s375 = sshll.u32 [#allocation10], 4
      %s376 = int_to_ptr.vmem [resolvable:$true] %s375
      %s377 = sshll.u32 %s4, 4
      %s378 = int_to_ptr.hbm [resolvable:$true] %s377
      %383 = dma.vmem_to_hbm [thread:$0]  %s376, 1024, %s378, [#allocation6], 128, 128, 8
    $region37: #{tpu_custom_call.1} parent=1 // pred_fallthru
      _
    // Predicated region
    $region38: #{tpu_custom_call.1} parent=1 // pred_check
      _
    $region39: #{tpu_custom_call.1} parent=1 // pred_check_branch
      %385 = sbr.rel (0) target = $region41
    $region40: #{tpu_custom_call.1} parent=1 // pred_region
      %387 = dma.done [#allocation6], 1024
    $region41: #{tpu_custom_call.1} parent=1 // pred_fallthru
      _
    %388 = vsyncpa [#allocation5], 1
    %389 = vsyncpa [#allocation8], 1
    %390 = vsyncpa [#allocation6], 1

</llo_original>
